<compile_context>
chip_gen: v7x
topology: tpu7x:2x2x1
jax: 0.10.0
libtpu: 0.0.40
codegen_flags: <defaults>
</compile_context>

<pallas_src>
import jax
import jax.numpy as jnp
from jax import lax
from jax.experimental import pallas as pl
from jax.experimental.pallas import tpu as pltpu


def _round_up(n, m):
    return ((n + m - 1) // m) * m


def gcn_kernel(a_ref, x_ref, o_ref, acc_ref):
    # a_ref:   (TV, TK)  block of dense adjacency (rows = target nodes, cols = source)
    # x_ref:   (TK, Fp)  block of the (padded) feature matrix
    # o_ref:   (TV, Fp)  output block (lane-dense, Fp % 128 == 0)
    # acc_ref: (TV, Fp)  float32 accumulator scratch, resident across the K axis
    k = pl.program_id(1)

    @pl.when(k == 0)
    def _():
        acc_ref[...] = jnp.zeros_like(acc_ref)

    acc_ref[...] += jnp.dot(
        a_ref[...], x_ref[...], preferred_element_type=jnp.float32
    )

    @pl.when(k == pl.num_programs(1) - 1)
    def _():
        y = jnp.maximum(acc_ref[...], 0.0)                    # F.relu
        sq = jnp.sum(y * y, axis=1, keepdims=True)            # row sum of squares
        # 1 / max(||y||, eps)  ==  rsqrt(max(sq, eps^2));  rsqrt runs on the EUP slot.
        inv = lax.rsqrt(jnp.maximum(sq, 1e-24))               # eps = 1e-12
        o_ref[...] = (y * inv).astype(o_ref.dtype)


def gcn_layer(
    x,
    edge,
    edge_weight=None,
    *,
    row_tile=256,
    k_tile=256,
    adj_dtype=jnp.bfloat16,
):
    """x: [V, F] float32, edge: [3, E] int32, edge_weight: [E] float32 or None.

    adj_dtype: dtype used for the dense adjacency and x inside the matmul
    (bfloat16 halves HBM traffic; accumulation stays float32).
    """
    V, F = x.shape
    edge_j = edge[0]
    edge_i = edge[2]
    if edge_weight is None:
        edge_weight = jnp.ones((edge.shape[1],), dtype=x.dtype)

    # ---- plain-JAX glue: data-dependent scatter, no rectangular BlockSpec form ----
    deg = jnp.zeros((V,), dtype=jnp.float32).at[edge_i].add(
        edge_weight.astype(jnp.float32)
    )
    w = edge_weight.astype(jnp.float32) / deg[edge_i]

    # Padded sizes: rows to row_tile, cols (source nodes) to k_tile, features to 128.
    vp_r = _round_up(V, row_tile)
    vp_c = _round_up(V, k_tile)
    fp = _round_up(F, 128)

    # Dense adjacency A[target, source] += w  (== torch.sparse.FloatTensor(edge[[2,0]], w))
    a_dense = (
        jnp.zeros((vp_r, vp_c), dtype=jnp.float32)
        .at[edge_i, edge_j]
        .add(w)
        .astype(adj_dtype)
    )
    x_pad = (
        jnp.zeros((vp_c, fp), dtype=adj_dtype)
        .at[:V, :F]
        .set(x.astype(adj_dtype))
    )

    grid = (vp_r // row_tile, vp_c // k_tile)

    adj_bytes = vp_r * vp_c * jnp.dtype(adj_dtype).itemsize
    x_bytes = vp_c * fp * jnp.dtype(adj_dtype).itemsize
    out_bytes = vp_r * fp * jnp.dtype(x.dtype).itemsize
    cost = pl.CostEstimate(
        flops=2 * vp_r * vp_c * fp,
        transcendentals=0,
        bytes_accessed=adj_bytes + x_bytes + out_bytes,
    )

    out_padded = pl.pallas_call(
        gcn_kernel,
        out_shape=jax.ShapeDtypeStruct((vp_r, fp), x.dtype),
        grid_spec=pltpu.PrefetchScalarGridSpec(
            num_scalar_prefetch=0,
            grid=grid,
            in_specs=[
                pl.BlockSpec((row_tile, k_tile), lambda i, k: (i, k)),  # A row/K block
                pl.BlockSpec((k_tile, fp), lambda i, k: (k, 0)),        # x K block
            ],
            out_specs=pl.BlockSpec((row_tile, fp), lambda i, k: (i, 0)),
            scratch_shapes=[pltpu.VMEM((row_tile, fp), jnp.float32)],
        ),
        compiler_params=pltpu.CompilerParams(
            dimension_semantics=("parallel", "arbitrary"),
            vmem_limit_bytes=32 * 1024 * 1024,
        ),
        cost_estimate=cost,
    )(a_dense, x_pad)

    return out_padded[:V, :F]


def gcn_layer_ref(x, edge, edge_weight):
    """Pure-JAX reference mirroring the PyTorch forward (float32 throughout)."""
    V = x.shape[0]
    edge_j, edge_i = edge[0], edge[2]
    if edge_weight is None:
        edge_weight = jnp.ones((edge.shape[1],), dtype=x.dtype)
    deg = jnp.zeros((V,), x.dtype).at[edge_i].add(edge_weight)
    w = edge_weight / deg[edge_i]
    a = jnp.zeros((V, V), x.dtype).at[edge_i, edge_j].add(w)
    y = jnp.maximum(a @ x, 0.0)
    n = jnp.sqrt(jnp.sum(y * y, axis=1, keepdims=True))
    return y / jnp.maximum(n, 1e-12)


def _make_graph(key, V, E_rand):
    """Edges with every node guaranteed >=1 incoming edge (deg > 0, like real GCN inputs)."""
    k2, k3, k4 = jax.random.split(key, 3)
    tgt_base = jnp.arange(V, dtype=jnp.int32)
    tgt_rand = jax.random.randint(k2, (E_rand,), 0, V, dtype=jnp.int32)
    src = jax.random.randint(k3, (V + E_rand,), 0, V, dtype=jnp.int32)
    tgt = jnp.concatenate([tgt_base, tgt_rand])
    edge_type = jnp.zeros_like(src)  # middle row unused by the forward pass
    edge = jnp.stack([src, edge_type, tgt])  # [3, E]
    edge_weight = jax.random.uniform(
        k4, (edge.shape[1],), dtype=jnp.float32, minval=0.1, maxval=1.0
    )
    return edge, edge_weight


if __name__ == "__main__":
    key = jax.random.PRNGKey(0)
    kx1, kg1, kx2, kg2 = jax.random.split(key, 4)

    # --- test 1: small graph (module-implied shapes), bf16 adjacency + f32 exact path ---
    V1, F1 = 16, 32
    x1 = jax.random.normal(kx1, (V1, F1), dtype=jnp.float32)
    edge1, ew1 = _make_graph(kg1, V1, 32)

    ref1 = gcn_layer_ref(x1, edge1, ew1)

    out1_bf16 = jax.block_until_ready(
        gcn_layer(x1, edge1, ew1, adj_dtype=jnp.bfloat16)
    )
    assert out1_bf16.shape == (V1, F1)
    assert jnp.allclose(out1_bf16, ref1, atol=2e-2, rtol=2e-2), "bf16 path mismatch"

    out1_f32 = jax.block_until_ready(
        gcn_layer(x1, edge1, ew1, adj_dtype=jnp.float32)
    )
    assert jnp.allclose(out1_f32, ref1, atol=1e-5, rtol=1e-5), "f32 path mismatch"

    # --- test 2: non-multiple V, multiple row/K grid blocks (exercises pl.when accumulate) ---
    V2, F2 = 300, 40
    x2 = jax.random.normal(kx2, (V2, F2), dtype=jnp.float32)
    edge2, ew2 = _make_graph(kg2, V2, 200)

    ref2 = gcn_layer_ref(x2, edge2, ew2)
    out2 = jax.block_until_ready(
        gcn_layer(x2, edge2, ew2, row_tile=128, k_tile=128, adj_dtype=jnp.bfloat16)
    )
    assert out2.shape == (V2, F2)
    assert jnp.allclose(out2, ref2, atol=2e-2, rtol=2e-2), "tiled path mismatch"

    print("KERNEL_OK")
</pallas_src>

<mosaic_0001>
module attributes {stable_mosaic.version = 11 : i64} {
  func.func @gcn_kernel(%arg0: i32, %arg1: i32, %arg2: memref<256x256xbf16, #tpu.memory_space<vmem>>, %arg3: memref<256x128xbf16, #tpu.memory_space<vmem>>, %arg4: memref<256x128xf32, #tpu.memory_space<vmem>>, %arg5: memref<256x128xf32, #tpu.memory_space<vmem>>) attributes {dimension_semantics = [#tpu.dimension_semantics<parallel>, #tpu.dimension_semantics<arbitrary>], iteration_bounds = array<i64: 1, 1>, scalar_prefetch = 0 : i64, scratch_operands = 1 : i64, tpu.core_type = #tpu.core_type<tc>, window_params = [{transform_indices = @transform_0, window_bounds = array<i64: 256, 256>}, {transform_indices = @transform_1, window_bounds = array<i64: 256, 128>}, {transform_indices = @transform_2, window_bounds = array<i64: 256, 128>}]} {
    %c0_i32 = arith.constant 0 : i32
    %0 = arith.cmpi eq, %arg1, %c0_i32 : i32
    %1 = arith.extui %0 : i1 to i32
    %c0_i32_0 = arith.constant 0 : i32
    %2 = arith.cmpi ne, %1, %c0_i32_0 : i32
    scf.if %2 {
      %cst_10 = arith.constant 0.000000e+00 : f32
      %12 = vector.broadcast %cst_10 : f32 to vector<256x128xf32>
      %c0_11 = arith.constant 0 : index
      %c0_12 = arith.constant 0 : index
      %13 = vector.load %arg5[%c0_11, %c0_12] : memref<256x128xf32, #tpu.memory_space<vmem>>, vector<256x128xf32>
      tpu.vector_store %arg5[%c0_11, %c0_12], %12 {strides = array<i32>} : memref<256x128xf32, #tpu.memory_space<vmem>>, vector<256x128xf32>,
    } else {
    }
    %c0 = arith.constant 0 : index
    %c0_1 = arith.constant 0 : index
    %3 = vector.load %arg5[%c0, %c0_1] : memref<256x128xf32, #tpu.memory_space<vmem>>, vector<256x128xf32>
    %c0_2 = arith.constant 0 : index
    %c0_3 = arith.constant 0 : index
    %4 = vector.load %arg2[%c0_2, %c0_3] : memref<256x256xbf16, #tpu.memory_space<vmem>>, vector<256x256xbf16>
    %c0_4 = arith.constant 0 : index
    %c0_5 = arith.constant 0 : index
    %5 = vector.load %arg3[%c0_4, %c0_5] : memref<256x128xbf16, #tpu.memory_space<vmem>>, vector<256x128xbf16>
    %cst = arith.constant dense<0.000000e+00> : vector<256x128xf32>
    %6 = tpu.matmul %4, %5, %cst {dimension_numbers = #tpu.dot_dimension_numbers<[1], [0], [0], [1], [0, 0, 1, 1], [], []>} : vector<256x256xbf16>, vector<256x128xbf16>, vector<256x128xf32> -> vector<256x128xf32>
    %7 = arith.addf %3, %6 : vector<256x128xf32>
    %c0_6 = arith.constant 0 : index
    %c0_7 = arith.constant 0 : index
    %8 = vector.load %arg5[%c0_6, %c0_7] : memref<256x128xf32, #tpu.memory_space<vmem>>, vector<256x128xf32>
    tpu.vector_store %arg5[%c0_6, %c0_7], %7 {strides = array<i32>} : memref<256x128xf32, #tpu.memory_space<vmem>>, vector<256x128xf32>,
    %c0_i32_8 = arith.constant 0 : i32
    %9 = arith.cmpi eq, %arg1, %c0_i32_8 : i32
    %10 = arith.extui %9 : i1 to i32
    %c0_i32_9 = arith.constant 0 : i32
    %11 = arith.cmpi ne, %10, %c0_i32_9 : i32
    scf.if %11 {
      %c0_10 = arith.constant 0 : index
      %c0_11 = arith.constant 0 : index
      %12 = vector.load %arg5[%c0_10, %c0_11] : memref<256x128xf32, #tpu.memory_space<vmem>>, vector<256x128xf32>
      %cst_12 = arith.constant 0.000000e+00 : f32
      %13 = vector.broadcast %cst_12 : f32 to vector<256x128xf32>
      %14 = arith.maximumf %12, %13 : vector<256x128xf32>
      %15 = arith.mulf %14, %14 : vector<256x128xf32>
      %cst_13 = arith.constant dense<0.000000e+00> : vector<256xf32>
      %16 = vector.multi_reduction <add>, %15, %cst_13 [1] : vector<256x128xf32> to vector<256xf32>
      %17 = vector.shape_cast %16 : vector<256xf32> to vector<256x1xf32>
      %cst_14 = arith.constant 1.000000e-24 : f32
      %18 = vector.broadcast %cst_14 : f32 to vector<256x1xf32>
      %19 = arith.maximumf %17, %18 : vector<256x1xf32>
      %20 = math.rsqrt %19 : vector<256x1xf32>
      %21 = vector.broadcast %20 : vector<256x1xf32> to vector<256x128xf32>
      %22 = arith.mulf %14, %21 : vector<256x128xf32>
      %c0_15 = arith.constant 0 : index
      %c0_16 = arith.constant 0 : index
      %23 = vector.load %arg4[%c0_15, %c0_16] : memref<256x128xf32, #tpu.memory_space<vmem>>, vector<256x128xf32>
      tpu.vector_store %arg4[%c0_15, %c0_16], %22 {strides = array<i32>} : memref<256x128xf32, #tpu.memory_space<vmem>>, vector<256x128xf32>,
    } else {
    }
    return
  }
  func.func @transform_0(%arg0: i32, %arg1: i32) -> (i32, i32) {
    %c0_i32 = arith.constant 0 : i32
    return %arg0, %arg1 : i32, i32
  }
  func.func @transform_1(%arg0: i32, %arg1: i32) -> (i32, i32) {
    %c0_i32 = arith.constant 0 : i32
    %c0_i32_0 = arith.constant 0 : i32
    return %arg1, %c0_i32 : i32, i32
  }
  func.func @transform_2(%arg0: i32, %arg1: i32) -> (i32, i32) {
    %c0_i32 = arith.constant 0 : i32
    %c0_i32_0 = arith.constant 0 : i32
    return %arg0, %c0_i32 : i32, i32
  }
}

</mosaic_0001>

<llo_original>
// kernel: tpu_custom_call.1
$region0: #{tpu_custom_call.1}
  #allocation0 [shape = 'u32[]', space=smem, size = 0x4, offset = 0x4, fixed_abs, tag = 'smem constant byte address 0x4 - core index']
  #allocation1 [shape = 'u32[144,128]{1,0:T(1,128)}', space=vmem, size = 0x12000, scoped, tag = 'internal scratch']
  #allocation2 [shape = 'f32[256,128]{1,0:T(8,128)}', space=vmem, size = 0x20000, scoped, tag = 'scratch operand']
  %s0 = inlined_call_operand.hbm [shape: bf16[256,256], index: 0, kind: input, shape index: {}]
  %s1 = inlined_call_operand.hbm [shape: bf16[256,128], index: 1, kind: input, shape index: {}]
  %s2 = inlined_call_operand.hbm [shape: f32[256,128], index: 2, kind: output, shape index: {}]
  %s3 = sld [smem:[#allocation0]]
  $region34: #{tpu_custom_call.1} parent=0
    _
  %s5 = ssub.s32 1, %s3
  %s6 = scalar_select 0, %s5, %s3
  $region1: #{tpu_custom_call.1} parent=0
    #allocation3 [shape = 'u8[131072]{0}', space=vmem, size = 0x20000, scoped, tag = 'input window, operand 0, single buffered']
    #allocation4 [shape = 's32[1]{0}', space=sflag, size = 0x4, scoped, tag = 'scoped memory for tpu_custom_call.1']
    #allocation5 [shape = 's32[1]{0}', space=sflag, size = 0x4, scoped, tag = 'scoped memory for tpu_custom_call.1']
    #allocation6 [shape = 'u8[65536]{0}', space=vmem, size = 0x10000, scoped, tag = 'input window, operand 1, single buffered']
    #allocation7 [shape = 's32[1]{0}', space=sflag, size = 0x4, scoped, tag = 'scoped memory for tpu_custom_call.1']
    #allocation8 [shape = 'u8[131072]{0}', space=vmem, size = 0x20000, scoped, tag = 'output window, operand 0, single buffered']
    %7 = vsyncpa [#allocation4], 0
    %8 = vsyncpa [#allocation7], 0
    %9 = vsyncpa [#allocation5], 0
    // Predicated region
    $region2: #{tpu_custom_call.1} parent=1 // pred_check
      _
    $region3: #{tpu_custom_call.1} parent=1 // pred_check_branch
      %11 = sbr.rel (0) target = $region5
    $region4: #{tpu_custom_call.1} parent=1 // pred_region
      %s13 = ssub.s32 4096, 4096
      %14 = vsyncadd [#allocation4], %s13
      %s15 = sshll.u32 [#allocation3], 4
      %s16 = int_to_ptr.vmem [resolvable:$true] %s15
      %21 = dma.hbm_to_vmem [thread:$0]  %s0, 4096, %s16, [#allocation4], 128, 128, 8
    $region5: #{tpu_custom_call.1} parent=1 // pred_fallthru
      _
    // Predicated region
    $region6: #{tpu_custom_call.1} parent=1 // pred_check
      _
    $region7: #{tpu_custom_call.1} parent=1 // pred_check_branch
      %23 = sbr.rel (0) target = $region9
    $region8: #{tpu_custom_call.1} parent=1 // pred_region
      %s25 = ssub.s32 2048, 2048
      %26 = vsyncadd [#allocation7], %s25
      %s27 = sshll.u32 [#allocation6], 4
      %s28 = int_to_ptr.vmem [resolvable:$true] %s27
      %33 = dma.hbm_to_vmem [thread:$0]  %s1, 2048, %s28, [#allocation7], 64, 64, 4
    $region9: #{tpu_custom_call.1} parent=1 // pred_fallthru
      _
    // Predicated region
    $region10: #{tpu_custom_call.1} parent=1 // pred_check
      _
    $region11: #{tpu_custom_call.1} parent=1 // pred_check_branch
      %35 = sbr.rel (0) target = $region13
    $region12: #{tpu_custom_call.1} parent=1 // pred_region
      %36 = dma.done [#allocation4], 4096
    $region13: #{tpu_custom_call.1} parent=1 // pred_fallthru
      _
    // Predicated region
    $region14: #{tpu_custom_call.1} parent=1 // pred_check
      _
    $region15: #{tpu_custom_call.1} parent=1 // pred_check_branch
      %38 = sbr.rel (0) target = $region17
    $region16: #{tpu_custom_call.1} parent=1 // pred_region
      %39 = dma.done [#allocation7], 2048
    $region17: #{tpu_custom_call.1} parent=1 // pred_fallthru
      _
    %p41 = scmp.eq.s32.totalorder 0, 0
    // Predicated region
    $region18: #{tpu_custom_call.1} parent=1 // pred_check
      %p42 = pneg %p41
    $region19: #{tpu_custom_call.1} parent=1 // pred_check_branch
      %44 = sbr.rel (%p42) target = $region21
    $region20: #{tpu_custom_call.1} parent=1 // pred_region
      %45 = vst [vmem:[#allocation2] sm:$0xff] 0.0
      %46 = vst [vmem:[#allocation2 + $0x8] sm:$0xff] 0.0
      %47 = vst [vmem:[#allocation2 + $0x10] sm:$0xff] 0.0
      %48 = vst [vmem:[#allocation2 + $0x18] sm:$0xff] 0.0
      %49 = vst [vmem:[#allocation2 + $0x20] sm:$0xff] 0.0
      %50 = vst [vmem:[#allocation2 + $0x28] sm:$0xff] 0.0
      %51 = vst [vmem:[#allocation2 + $0x30] sm:$0xff] 0.0
      %52 = vst [vmem:[#allocation2 + $0x38] sm:$0xff] 0.0
      %53 = vst [vmem:[#allocation2 + $0x40] sm:$0xff] 0.0
      %54 = vst [vmem:[#allocation2 + $0x48] sm:$0xff] 0.0
      %55 = vst [vmem:[#allocation2 + $0x50] sm:$0xff] 0.0
      %56 = vst [vmem:[#allocation2 + $0x58] sm:$0xff] 0.0
      %57 = vst [vmem:[#allocation2 + $0x60] sm:$0xff] 0.0
      %58 = vst [vmem:[#allocation2 + $0x68] sm:$0xff] 0.0
      %59 = vst [vmem:[#allocation2 + $0x70] sm:$0xff] 0.0
      %60 = vst [vmem:[#allocation2 + $0x78] sm:$0xff] 0.0
      %61 = vst [vmem:[#allocation2 + $0x80] sm:$0xff] 0.0
      %62 = vst [vmem:[#allocation2 + $0x88] sm:$0xff] 0.0
      %63 = vst [vmem:[#allocation2 + $0x90] sm:$0xff] 0.0
      %64 = vst [vmem:[#allocation2 + $0x98] sm:$0xff] 0.0
      %65 = vst [vmem:[#allocation2 + $0xa0] sm:$0xff] 0.0
      %66 = vst [vmem:[#allocation2 + $0xa8] sm:$0xff] 0.0
      %67 = vst [vmem:[#allocation2 + $0xb0] sm:$0xff] 0.0
      %68 = vst [vmem:[#allocation2 + $0xb8] sm:$0xff] 0.0
      %69 = vst [vmem:[#allocation2 + $0xc0] sm:$0xff] 0.0
      %70 = vst [vmem:[#allocation2 + $0xc8] sm:$0xff] 0.0
      %71 = vst [vmem:[#allocation2 + $0xd0] sm:$0xff] 0.0
      %72 = vst [vmem:[#allocation2 + $0xd8] sm:$0xff] 0.0
      %73 = vst [vmem:[#allocation2 + $0xe0] sm:$0xff] 0.0
      %74 = vst [vmem:[#allocation2 + $0xe8] sm:$0xff] 0.0
      %75 = vst [vmem:[#allocation2 + $0xf0] sm:$0xff] 0.0
      %76 = vst [vmem:[#allocation2 + $0xf8] sm:$0xff] 0.0
    $region21: #{tpu_custom_call.1} parent=1 // pred_fallthru
      _
    %v77 = vld [vmem:[#allocation2] sm:$0xff]
    %v78 = vld [vmem:[#allocation2 + $0x8] sm:$0xff]
    %v79 = vld [vmem:[#allocation2 + $0x10] sm:$0xff]
    %v80 = vld [vmem:[#allocation2 + $0x18] sm:$0xff]
    %v81 = vld [vmem:[#allocation2 + $0x20] sm:$0xff]
    %v82 = vld [vmem:[#allocation2 + $0x28] sm:$0xff]
    %v83 = vld [vmem:[#allocation2 + $0x30] sm:$0xff]
    %v84 = vld [vmem:[#allocation2 + $0x38] sm:$0xff]
    %v85 = vld [vmem:[#allocation2 + $0x40] sm:$0xff]
    %v86 = vld [vmem:[#allocation2 + $0x48] sm:$0xff]
    %v87 = vld [vmem:[#allocation2 + $0x50] sm:$0xff]
    %v88 = vld [vmem:[#allocation2 + $0x58] sm:$0xff]
    %v89 = vld [vmem:[#allocation2 + $0x60] sm:$0xff]
    %v90 = vld [vmem:[#allocation2 + $0x68] sm:$0xff]
    %v91 = vld [vmem:[#allocation2 + $0x70] sm:$0xff]
    %v92 = vld [vmem:[#allocation2 + $0x78] sm:$0xff]
    %v93 = vld [vmem:[#allocation2 + $0x80] sm:$0xff]
    %v94 = vld [vmem:[#allocation2 + $0x88] sm:$0xff]
    %v95 = vld [vmem:[#allocation2 + $0x90] sm:$0xff]
    %v96 = vld [vmem:[#allocation2 + $0x98] sm:$0xff]
    %v97 = vld [vmem:[#allocation2 + $0xa0] sm:$0xff]
    %v98 = vld [vmem:[#allocation2 + $0xa8] sm:$0xff]
    %v99 = vld [vmem:[#allocation2 + $0xb0] sm:$0xff]
    %v100 = vld [vmem:[#allocation2 + $0xb8] sm:$0xff]
    %v101 = vld [vmem:[#allocation2 + $0xc0] sm:$0xff]
    %v102 = vld [vmem:[#allocation2 + $0xc8] sm:$0xff]
    %v103 = vld [vmem:[#allocation2 + $0xd0] sm:$0xff]
    %v104 = vld [vmem:[#allocation2 + $0xd8] sm:$0xff]
    %v105 = vld [vmem:[#allocation2 + $0xe0] sm:$0xff]
    %v106 = vld [vmem:[#allocation2 + $0xe8] sm:$0xff]
    %v107 = vld [vmem:[#allocation2 + $0xf0] sm:$0xff]
    %v108 = vld [vmem:[#allocation2 + $0xf8] sm:$0xff]
    %v109 = vld [vmem:[#allocation3] sm:$0xff]
    %v110 = vld [vmem:[#allocation3 + $0x8] sm:$0xff]
    %v111 = vld [vmem:[#allocation3 + $0x10] sm:$0xff]
    %v112 = vld [vmem:[#allocation3 + $0x18] sm:$0xff]
    %v113 = vld [vmem:[#allocation3 + $0x20] sm:$0xff]
    %v114 = vld [vmem:[#allocation3 + $0x28] sm:$0xff]
    %v115 = vld [vmem:[#allocation3 + $0x30] sm:$0xff]
    %v116 = vld [vmem:[#allocation3 + $0x38] sm:$0xff]
    %v117 = vld [vmem:[#allocation3 + $0x40] sm:$0xff]
    %v118 = vld [vmem:[#allocation3 + $0x48] sm:$0xff]
    %v119 = vld [vmem:[#allocation3 + $0x50] sm:$0xff]
    %v120 = vld [vmem:[#allocation3 + $0x58] sm:$0xff]
    %v121 = vld [vmem:[#allocation3 + $0x60] sm:$0xff]
    %v122 = vld [vmem:[#allocation3 + $0x68] sm:$0xff]
    %v123 = vld [vmem:[#allocation3 + $0x70] sm:$0xff]
    %v124 = vld [vmem:[#allocation3 + $0x78] sm:$0xff]
    %v125 = vld [vmem:[#allocation3 + $0x80] sm:$0xff]
    %v126 = vld [vmem:[#allocation3 + $0x88] sm:$0xff]
    %v127 = vld [vmem:[#allocation3 + $0x90] sm:$0xff]
    %v128 = vld [vmem:[#allocation3 + $0x98] sm:$0xff]
    %v129 = vld [vmem:[#allocation3 + $0xa0] sm:$0xff]
    %v130 = vld [vmem:[#allocation3 + $0xa8] sm:$0xff]
    %v131 = vld [vmem:[#allocation3 + $0xb0] sm:$0xff]
    %v132 = vld [vmem:[#allocation3 + $0xb8] sm:$0xff]
    %v133 = vld [vmem:[#allocation3 + $0xc0] sm:$0xff]
    %v134 = vld [vmem:[#allocation3 + $0xc8] sm:$0xff]
    %v135 = vld [vmem:[#allocation3 + $0xd0] sm:$0xff]
    %v136 = vld [vmem:[#allocation3 + $0xd8] sm:$0xff]
    %v137 = vld [vmem:[#allocation3 + $0xe0] sm:$0xff]
    %v138 = vld [vmem:[#allocation3 + $0xe8] sm:$0xff]
    %v139 = vld [vmem:[#allocation3 + $0xf0] sm:$0xff]
    %v140 = vld [vmem:[#allocation3 + $0xf8] sm:$0xff]
    %v141 = vld [vmem:[#allocation6] sm:$0xf]
    %v142 = vld [vmem:[#allocation6 + $0x4] sm:$0xf]
    %v143 = vld [vmem:[#allocation6 + $0x8] sm:$0xf]
    %v144 = vld [vmem:[#allocation6 + $0xc] sm:$0xf]
    %v145 = vld [vmem:[#allocation6 + $0x10] sm:$0xf]
    %v146 = vld [vmem:[#allocation6 + $0x14] sm:$0xf]
    %v147 = vld [vmem:[#allocation6 + $0x18] sm:$0xf]
    %v148 = vld [vmem:[#allocation6 + $0x1c] sm:$0xf]
    %v149 = vld [vmem:[#allocation6 + $0x20] sm:$0xf]
    %v150 = vld [vmem:[#allocation6 + $0x24] sm:$0xf]
    %v151 = vld [vmem:[#allocation6 + $0x28] sm:$0xf]
    %v152 = vld [vmem:[#allocation6 + $0x2c] sm:$0xf]
    %v153 = vld [vmem:[#allocation6 + $0x30] sm:$0xf]
    %v154 = vld [vmem:[#allocation6 + $0x34] sm:$0xf]
    %v155 = vld [vmem:[#allocation6 + $0x38] sm:$0xf]
    %v156 = vld [vmem:[#allocation6 + $0x3c] sm:$0xf]
    %v157 = vld [vmem:[#allocation6 + $0x40] sm:$0xf]
    %v158 = vld [vmem:[#allocation6 + $0x44] sm:$0xf]
    %v159 = vld [vmem:[#allocation6 + $0x48] sm:$0xf]
    %v160 = vld [vmem:[#allocation6 + $0x4c] sm:$0xf]
    %v161 = vld [vmem:[#allocation6 + $0x50] sm:$0xf]
    %v162 = vld [vmem:[#allocation6 + $0x54] sm:$0xf]
    %v163 = vld [vmem:[#allocation6 + $0x58] sm:$0xf]
    %v164 = vld [vmem:[#allocation6 + $0x5c] sm:$0xf]
    %v165 = vld [vmem:[#allocation6 + $0x60] sm:$0xf]
    %v166 = vld [vmem:[#allocation6 + $0x64] sm:$0xf]
    %v167 = vld [vmem:[#allocation6 + $0x68] sm:$0xf]
    %v168 = vld [vmem:[#allocation6 + $0x6c] sm:$0xf]
    %v169 = vld [vmem:[#allocation6 + $0x70] sm:$0xf]
    %v170 = vld [vmem:[#allocation6 + $0x74] sm:$0xf]
    %v171 = vld [vmem:[#allocation6 + $0x78] sm:$0xf]
    %v172 = vld [vmem:[#allocation6 + $0x7c] sm:$0xf]
    %v205 = vunpack.c.l.b16 %v109
    %v206 = vunpack.c.h.b16 %v109
    %v207 = vunpack.c.l.b16 %v110
    %v208 = vunpack.c.h.b16 %v110
    %v209 = vunpack.c.l.b16 %v111
    %v210 = vunpack.c.h.b16 %v111
    %v211 = vunpack.c.l.b16 %v112
    %v212 = vunpack.c.h.b16 %v112
    %v213 = vunpack.c.l.b16 %v113
    %v214 = vunpack.c.h.b16 %v113
    %v215 = vunpack.c.l.b16 %v114
    %v216 = vunpack.c.h.b16 %v114
    %v217 = vunpack.c.l.b16 %v115
    %v218 = vunpack.c.h.b16 %v115
    %v219 = vunpack.c.l.b16 %v116
    %v220 = vunpack.c.h.b16 %v116
    %v221 = vunpack.c.l.b16 %v117
    %v222 = vunpack.c.h.b16 %v117
    %v223 = vunpack.c.l.b16 %v118
    %v224 = vunpack.c.h.b16 %v118
    %v225 = vunpack.c.l.b16 %v119
    %v226 = vunpack.c.h.b16 %v119
    %v227 = vunpack.c.l.b16 %v120
    %v228 = vunpack.c.h.b16 %v120
    %v229 = vunpack.c.l.b16 %v121
    %v230 = vunpack.c.h.b16 %v121
    %v231 = vunpack.c.l.b16 %v122
    %v232 = vunpack.c.h.b16 %v122
    %v233 = vunpack.c.l.b16 %v123
    %v234 = vunpack.c.h.b16 %v123
    %v235 = vunpack.c.l.b16 %v124
    %v236 = vunpack.c.h.b16 %v124
    %v237 = vunpack.c.l.b16 %v125
    %v238 = vunpack.c.h.b16 %v125
    %v239 = vunpack.c.l.b16 %v126
    %v240 = vunpack.c.h.b16 %v126
    %v241 = vunpack.c.l.b16 %v127
    %v242 = vunpack.c.h.b16 %v127
    %v243 = vunpack.c.l.b16 %v128
    %v244 = vunpack.c.h.b16 %v128
    %v245 = vunpack.c.l.b16 %v129
    %v246 = vunpack.c.h.b16 %v129
    %v247 = vunpack.c.l.b16 %v130
    %v248 = vunpack.c.h.b16 %v130
    %v249 = vunpack.c.l.b16 %v131
    %v250 = vunpack.c.h.b16 %v131
    %v251 = vunpack.c.l.b16 %v132
    %v252 = vunpack.c.h.b16 %v132
    %v253 = vunpack.c.l.b16 %v133
    %v254 = vunpack.c.h.b16 %v133
    %v255 = vunpack.c.l.b16 %v134
    %v256 = vunpack.c.h.b16 %v134
    %v257 = vunpack.c.l.b16 %v135
    %v258 = vunpack.c.h.b16 %v135
    %v259 = vunpack.c.l.b16 %v136
    %v260 = vunpack.c.h.b16 %v136
    %v261 = vunpack.c.l.b16 %v137
    %v262 = vunpack.c.h.b16 %v137
    %v263 = vunpack.c.l.b16 %v138
    %v264 = vunpack.c.h.b16 %v138
    %v265 = vunpack.c.l.b16 %v139
    %v266 = vunpack.c.h.b16 %v139
    %v267 = vunpack.c.l.b16 %v140
    %v268 = vunpack.c.h.b16 %v140
    %v269 = vpack.c.b16 %v207, %v205
    %v270 = vpack.c.b16 %v208, %v206
    %v271 = vpack.c.b16 %v211, %v209
    %v272 = vpack.c.b16 %v212, %v210
    %v273 = vpack.c.b16 %v215, %v213
    %v274 = vpack.c.b16 %v216, %v214
    %v275 = vpack.c.b16 %v219, %v217
    %v276 = vpack.c.b16 %v220, %v218
    %v277 = vpack.c.b16 %v223, %v221
    %v278 = vpack.c.b16 %v224, %v222
    %v279 = vpack.c.b16 %v227, %v225
    %v280 = vpack.c.b16 %v228, %v226
    %v281 = vpack.c.b16 %v231, %v229
    %v282 = vpack.c.b16 %v232, %v230
    %v283 = vpack.c.b16 %v235, %v233
    %v284 = vpack.c.b16 %v236, %v234
    %v285 = vpack.c.b16 %v239, %v237
    %v286 = vpack.c.b16 %v240, %v238
    %v287 = vpack.c.b16 %v243, %v241
    %v288 = vpack.c.b16 %v244, %v242
    %v289 = vpack.c.b16 %v247, %v245
    %v290 = vpack.c.b16 %v248, %v246
    %v291 = vpack.c.b16 %v251, %v249
    %v292 = vpack.c.b16 %v252, %v250
    %v293 = vpack.c.b16 %v255, %v253
    %v294 = vpack.c.b16 %v256, %v254
    %v295 = vpack.c.b16 %v259, %v257
    %v296 = vpack.c.b16 %v260, %v258
    %v297 = vpack.c.b16 %v263, %v261
    %v298 = vpack.c.b16 %v264, %v262
    %v299 = vpack.c.b16 %v267, %v265
    %v300 = vpack.c.b16 %v268, %v266
    %v365 = vunpack.c.l.b16 %v141
    %v366 = vunpack.c.l.b16 %v142
    %v367 = vunpack.c.l.b16 %v143
    %v368 = vunpack.c.l.b16 %v144
    %v369 = vunpack.c.l.b16 %v145
    %v370 = vunpack.c.l.b16 %v146
    %v371 = vunpack.c.l.b16 %v147
    %v372 = vunpack.c.l.b16 %v148
    %v373 = vunpack.c.l.b16 %v149
    %v374 = vunpack.c.l.b16 %v150
    %v375 = vunpack.c.l.b16 %v151
    %v376 = vunpack.c.l.b16 %v152
    %v377 = vunpack.c.l.b16 %v153
    %v378 = vunpack.c.l.b16 %v154
    %v379 = vunpack.c.l.b16 %v155
    %v380 = vunpack.c.l.b16 %v156
    %v381 = vunpack.c.l.b16 %v157
    %v382 = vunpack.c.l.b16 %v158
    %v383 = vunpack.c.l.b16 %v159
    %v384 = vunpack.c.l.b16 %v160
    %v385 = vunpack.c.l.b16 %v161
    %v386 = vunpack.c.l.b16 %v162
    %v387 = vunpack.c.l.b16 %v163
    %v388 = vunpack.c.l.b16 %v164
    %v389 = vunpack.c.l.b16 %v165
    %v390 = vunpack.c.l.b16 %v166
    %v391 = vunpack.c.l.b16 %v167
    %v392 = vunpack.c.l.b16 %v168
    %v393 = vunpack.c.l.b16 %v169
    %v394 = vunpack.c.l.b16 %v170
    %v395 = vunpack.c.l.b16 %v171
    %v396 = vunpack.c.l.b16 %v172
    %v397 = vpack.c.b16 %v366, %v365
    %v398 = vpack.c.b16 %v368, %v367
    %v399 = vpack.c.b16 %v370, %v369
    %v400 = vpack.c.b16 %v372, %v371
    %v401 = vpack.c.b16 %v374, %v373
    %v402 = vpack.c.b16 %v376, %v375
    %v403 = vpack.c.b16 %v378, %v377
    %v404 = vpack.c.b16 %v380, %v379
    %v405 = vpack.c.b16 %v382, %v381
    %v406 = vpack.c.b16 %v384, %v383
    %v407 = vpack.c.b16 %v386, %v385
    %v408 = vpack.c.b16 %v388, %v387
    %v409 = vpack.c.b16 %v390, %v389
    %v410 = vpack.c.b16 %v392, %v391
    %v411 = vpack.c.b16 %v394, %v393
    %v412 = vpack.c.b16 %v396, %v395
    %429 = vmatprep.subr.bf16.mxu0 0
    %430 = vmatpush1.bf16.msra.mxu0 %v397
    %431 = vmatprep.subr.bf16.mxu0 0
    %432 = vmatpush1.bf16.msra.mxu0 %v398
    %433 = vmatprep.subr.bf16.mxu0 0
    %434 = vmatpush1.bf16.msra.mxu0 %v399
    %435 = vmatprep.subr.bf16.mxu0 0
    %436 = vmatpush1.bf16.msra.mxu0 %v400
    %437 = vmatprep.subr.bf16.mxu0 0
    %438 = vmatpush1.bf16.msra.mxu0 %v401
    %439 = vmatprep.subr.bf16.mxu0 0
    %440 = vmatpush1.bf16.msra.mxu0 %v402
    %441 = vmatprep.subr.bf16.mxu0 0
    %442 = vmatpush1.bf16.msra.mxu0 %v403
    %443 = vmatprep.subr.bf16.mxu0 0
    %444 = vmatpush1.bf16.msra.mxu0 %v404
    %445 = vmatprep.subr.bf16.mxu0 0
    %446 = vmatpush1.bf16.msra.mxu0 %v405
    %447 = vmatprep.subr.bf16.mxu0 0
    %448 = vmatpush1.bf16.msra.mxu0 %v406
    %449 = vmatprep.subr.bf16.mxu0 0
    %450 = vmatpush1.bf16.msra.mxu0 %v407
    %451 = vmatprep.subr.bf16.mxu0 0
    %452 = vmatpush1.bf16.msra.mxu0 %v408
    %453 = vmatprep.subr.bf16.mxu0 0
    %454 = vmatpush1.bf16.msra.mxu0 %v409
    %455 = vmatprep.subr.bf16.mxu0 0
    %456 = vmatpush1.bf16.msra.mxu0 %v410
    %457 = vmatprep.subr.bf16.mxu0 0
    %458 = vmatpush1.bf16.msra.mxu0 %v411
    %459 = vmatprep.subr.bf16.mxu0 0
    %460 = vmatpush1.bf16.msra.mxu0 %v412
    %461 = vmatprep.mubr.bf16.mxu0 %v270
    %462 = vmatmul.mubr.bf16.gmra.mrb[0].mxu0 %v269
    %v463 = vpop.f32.mrb[0].mxu0
    %v464 = vadd.f32 0.0, %v463
    %v465 = vpop.f32.mrb[0].mxu0
    %v466 = vpop.f32.mrb[0].mxu0
    %v467 = vadd.f32 0.0, %v466
    %v468 = vpop.f32.mrb[0].mxu0
    %469 = vmatprep.mubr.bf16.mxu0 %v272
    %470 = vmatmul.mubr.bf16.gmra.mrb[0].mxu0 %v271
    %v471 = vpop.f32.mrb[0].mxu0
    %v472 = vadd.f32 0.0, %v471
    %v473 = vpop.f32.mrb[0].mxu0
    %v474 = vpop.f32.mrb[0].mxu0
    %v475 = vadd.f32 0.0, %v474
    %v476 = vpop.f32.mrb[0].mxu0
    %477 = vmatprep.mubr.bf16.mxu0 %v274
    %478 = vmatmul.mubr.bf16.gmra.mrb[0].mxu0 %v273
    %v479 = vpop.f32.mrb[0].mxu0
    %v480 = vadd.f32 0.0, %v479
    %v481 = vpop.f32.mrb[0].mxu0
    %v482 = vpop.f32.mrb[0].mxu0
    %v483 = vadd.f32 0.0, %v482
    %v484 = vpop.f32.mrb[0].mxu0
    %485 = vmatprep.mubr.bf16.mxu0 %v276
    %486 = vmatmul.mubr.bf16.gmra.mrb[0].mxu0 %v275
    %v487 = vpop.f32.mrb[0].mxu0
    %v488 = vadd.f32 0.0, %v487
    %v489 = vpop.f32.mrb[0].mxu0
    %v490 = vpop.f32.mrb[0].mxu0
    %v491 = vadd.f32 0.0, %v490
    %v492 = vpop.f32.mrb[0].mxu0
    %493 = vmatprep.mubr.bf16.mxu0 %v278
    %494 = vmatmul.mubr.bf16.gmra.mrb[0].mxu0 %v277
    %v495 = vpop.f32.mrb[0].mxu0
    %v496 = vadd.f32 0.0, %v495
    %v497 = vpop.f32.mrb[0].mxu0
    %v498 = vpop.f32.mrb[0].mxu0
    %v499 = vadd.f32 0.0, %v498
    %v500 = vpop.f32.mrb[0].mxu0
    %501 = vmatprep.mubr.bf16.mxu0 %v280
    %502 = vmatmul.mubr.bf16.gmra.mrb[0].mxu0 %v279
    %v503 = vpop.f32.mrb[0].mxu0
    %v504 = vadd.f32 0.0, %v503
    %v505 = vpop.f32.mrb[0].mxu0
    %v506 = vpop.f32.mrb[0].mxu0
    %v507 = vadd.f32 0.0, %v506
    %v508 = vpop.f32.mrb[0].mxu0
    %509 = vmatprep.mubr.bf16.mxu0 %v282
    %510 = vmatmul.mubr.bf16.gmra.mrb[0].mxu0 %v281
    %v511 = vpop.f32.mrb[0].mxu0
    %v512 = vadd.f32 0.0, %v511
    %v513 = vpop.f32.mrb[0].mxu0
    %v514 = vpop.f32.mrb[0].mxu0
    %v515 = vadd.f32 0.0, %v514
    %v516 = vpop.f32.mrb[0].mxu0
    %517 = vmatprep.mubr.bf16.mxu0 %v284
    %518 = vmatmul.mubr.bf16.gmra.mrb[0].mxu0 %v283
    %v519 = vpop.f32.mrb[0].mxu0
    %v520 = vadd.f32 0.0, %v519
    %v521 = vpop.f32.mrb[0].mxu0
    %v522 = vpop.f32.mrb[0].mxu0
    %v523 = vadd.f32 0.0, %v522
    %v524 = vpop.f32.mrb[0].mxu0
    %525 = vmatprep.mubr.bf16.mxu0 %v286
    %526 = vmatmul.mubr.bf16.gmra.mrb[0].mxu0 %v285
    %v527 = vpop.f32.mrb[0].mxu0
    %v528 = vadd.f32 0.0, %v527
    %v529 = vpop.f32.mrb[0].mxu0
    %v530 = vpop.f32.mrb[0].mxu0
    %v531 = vadd.f32 0.0, %v530
    %v532 = vpop.f32.mrb[0].mxu0
    %533 = vmatprep.mubr.bf16.mxu0 %v288
    %534 = vmatmul.mubr.bf16.gmra.mrb[0].mxu0 %v287
    %v535 = vpop.f32.mrb[0].mxu0
    %v536 = vadd.f32 0.0, %v535
    %v537 = vpop.f32.mrb[0].mxu0
    %v538 = vpop.f32.mrb[0].mxu0
    %v539 = vadd.f32 0.0, %v538
    %v540 = vpop.f32.mrb[0].mxu0
    %541 = vmatprep.mubr.bf16.mxu0 %v290
    %542 = vmatmul.mubr.bf16.gmra.mrb[0].mxu0 %v289
    %v543 = vpop.f32.mrb[0].mxu0
    %v544 = vadd.f32 0.0, %v543
    %v545 = vpop.f32.mrb[0].mxu0
    %v546 = vpop.f32.mrb[0].mxu0
    %v547 = vadd.f32 0.0, %v546
    %v548 = vpop.f32.mrb[0].mxu0
    %549 = vmatprep.mubr.bf16.mxu0 %v292
    %550 = vmatmul.mubr.bf16.gmra.mrb[0].mxu0 %v291
    %v551 = vpop.f32.mrb[0].mxu0
    %v552 = vadd.f32 0.0, %v551
    %v553 = vpop.f32.mrb[0].mxu0
    %v554 = vpop.f32.mrb[0].mxu0
    %v555 = vadd.f32 0.0, %v554
    %v556 = vpop.f32.mrb[0].mxu0
    %557 = vmatprep.mubr.bf16.mxu0 %v294
    %558 = vmatmul.mubr.bf16.gmra.mrb[0].mxu0 %v293
    %v559 = vpop.f32.mrb[0].mxu0
    %v560 = vadd.f32 0.0, %v559
    %v561 = vpop.f32.mrb[0].mxu0
    %v562 = vpop.f32.mrb[0].mxu0
    %v563 = vadd.f32 0.0, %v562
    %v564 = vpop.f32.mrb[0].mxu0
    %565 = vmatprep.mubr.bf16.mxu0 %v296
    %566 = vmatmul.mubr.bf16.gmra.mrb[0].mxu0 %v295
    %v567 = vpop.f32.mrb[0].mxu0
    %v568 = vadd.f32 0.0, %v567
    %v569 = vpop.f32.mrb[0].mxu0
    %v570 = vpop.f32.mrb[0].mxu0
    %v571 = vadd.f32 0.0, %v570
    %v572 = vpop.f32.mrb[0].mxu0
    %573 = vmatprep.mubr.bf16.mxu0 %v298
    %574 = vmatmul.mubr.bf16.gmra.mrb[0].mxu0 %v297
    %v575 = vpop.f32.mrb[0].mxu0
    %v576 = vadd.f32 0.0, %v575
    %v577 = vpop.f32.mrb[0].mxu0
    %v578 = vpop.f32.mrb[0].mxu0
    %v579 = vadd.f32 0.0, %v578
    %v580 = vpop.f32.mrb[0].mxu0
    %581 = vmatprep.mubr.bf16.mxu0 %v300
    %582 = vmatmul.mubr.bf16.gmra.mrb[0].mxu0 %v299
    %v583 = vpop.f32.mrb[0].mxu0
    %v584 = vadd.f32 0.0, %v583
    %v585 = vpop.f32.mrb[0].mxu0
    %v586 = vpop.f32.mrb[0].mxu0
    %v587 = vadd.f32 0.0, %v586
    %v588 = vpop.f32.mrb[0].mxu0
    %589 = vdwg.mxu0
    %v590 = vadd.f32 %v77, %v464
    %v591 = vadd.f32 %v78, %v467
    %v592 = vadd.f32 %v79, %v472
    %v593 = vadd.f32 %v80, %v475
    %v594 = vadd.f32 %v81, %v480
    %v595 = vadd.f32 %v82, %v483
    %v596 = vadd.f32 %v83, %v488
    %v597 = vadd.f32 %v84, %v491
    %v598 = vadd.f32 %v85, %v496
    %v599 = vadd.f32 %v86, %v499
    %v600 = vadd.f32 %v87, %v504
    %v601 = vadd.f32 %v88, %v507
    %v602 = vadd.f32 %v89, %v512
    %v603 = vadd.f32 %v90, %v515
    %v604 = vadd.f32 %v91, %v520
    %v605 = vadd.f32 %v92, %v523
    %v606 = vadd.f32 %v93, %v528
    %v607 = vadd.f32 %v94, %v531
    %v608 = vadd.f32 %v95, %v536
    %v609 = vadd.f32 %v96, %v539
    %v610 = vadd.f32 %v97, %v544
    %v611 = vadd.f32 %v98, %v547
    %v612 = vadd.f32 %v99, %v552
    %v613 = vadd.f32 %v100, %v555
    %v614 = vadd.f32 %v101, %v560
    %v615 = vadd.f32 %v102, %v563
    %v616 = vadd.f32 %v103, %v568
    %v617 = vadd.f32 %v104, %v571
    %v618 = vadd.f32 %v105, %v576
    %v619 = vadd.f32 %v106, %v579
    %v620 = vadd.f32 %v107, %v584
    %v621 = vadd.f32 %v108, %v587
    %622 = vst [vmem:[#allocation2] sm:$0xff] %v590
    %623 = vst [vmem:[#allocation2 + $0x8] sm:$0xff] %v591
    %624 = vst [vmem:[#allocation2 + $0x10] sm:$0xff] %v592
    %625 = vst [vmem:[#allocation2 + $0x18] sm:$0xff] %v593
    %626 = vst [vmem:[#allocation2 + $0x20] sm:$0xff] %v594
    %627 = vst [vmem:[#allocation2 + $0x28] sm:$0xff] %v595
    %628 = vst [vmem:[#allocation2 + $0x30] sm:$0xff] %v596
    %629 = vst [vmem:[#allocation2 + $0x38] sm:$0xff] %v597
    %630 = vst [vmem:[#allocation2 + $0x40] sm:$0xff] %v598
    %631 = vst [vmem:[#allocation2 + $0x48] sm:$0xff] %v599
    %632 = vst [vmem:[#allocation2 + $0x50] sm:$0xff] %v600
    %633 = vst [vmem:[#allocation2 + $0x58] sm:$0xff] %v601
    %634 = vst [vmem:[#allocation2 + $0x60] sm:$0xff] %v602
    %635 = vst [vmem:[#allocation2 + $0x68] sm:$0xff] %v603
    %636 = vst [vmem:[#allocation2 + $0x70] sm:$0xff] %v604
    %637 = vst [vmem:[#allocation2 + $0x78] sm:$0xff] %v605
    %638 = vst [vmem:[#allocation2 + $0x80] sm:$0xff] %v606
    %639 = vst [vmem:[#allocation2 + $0x88] sm:$0xff] %v607
    %640 = vst [vmem:[#allocation2 + $0x90] sm:$0xff] %v608
    %641 = vst [vmem:[#allocation2 + $0x98] sm:$0xff] %v609
    %642 = vst [vmem:[#allocation2 + $0xa0] sm:$0xff] %v610
    %643 = vst [vmem:[#allocation2 + $0xa8] sm:$0xff] %v611
    %644 = vst [vmem:[#allocation2 + $0xb0] sm:$0xff] %v612
    %645 = vst [vmem:[#allocation2 + $0xb8] sm:$0xff] %v613
    %646 = vst [vmem:[#allocation2 + $0xc0] sm:$0xff] %v614
    %647 = vst [vmem:[#allocation2 + $0xc8] sm:$0xff] %v615
    %648 = vst [vmem:[#allocation2 + $0xd0] sm:$0xff] %v616
    %649 = vst [vmem:[#allocation2 + $0xd8] sm:$0xff] %v617
    %650 = vst [vmem:[#allocation2 + $0xe0] sm:$0xff] %v618
    %651 = vst [vmem:[#allocation2 + $0xe8] sm:$0xff] %v619
    %652 = vst [vmem:[#allocation2 + $0xf0] sm:$0xff] %v620
    %653 = vst [vmem:[#allocation2 + $0xf8] sm:$0xff] %v621
    // Predicated region
    $region22: #{tpu_custom_call.1} parent=1 // pred_check
      %p654 = pneg %p41
    $region23: #{tpu_custom_call.1} parent=1 // pred_check_branch
      %656 = sbr.rel (%p654) target = $region25
    $region24: #{tpu_custom_call.1} parent=1 // pred_region
      %v657 = vld [vmem:[#allocation2] sm:$0xff]
      %v658 = vld [vmem:[#allocation2 + $0x8] sm:$0xff]
      %v659 = vld [vmem:[#allocation2 + $0x10] sm:$0xff]
      %v660 = vld [vmem:[#allocation2 + $0x18] sm:$0xff]
      %v661 = vld [vmem:[#allocation2 + $0x20] sm:$0xff]
      %v662 = vld [vmem:[#allocation2 + $0x28] sm:$0xff]
      %v663 = vld [vmem:[#allocation2 + $0x30] sm:$0xff]
      %v664 = vld [vmem:[#allocation2 + $0x38] sm:$0xff]
      %v665 = vld [vmem:[#allocation2 + $0x40] sm:$0xff]
      %v666 = vld [vmem:[#allocation2 + $0x48] sm:$0xff]
      %v667 = vld [vmem:[#allocation2 + $0x50] sm:$0xff]
      %v668 = vld [vmem:[#allocation2 + $0x58] sm:$0xff]
      %v669 = vld [vmem:[#allocation2 + $0x60] sm:$0xff]
      %v670 = vld [vmem:[#allocation2 + $0x68] sm:$0xff]
      %v671 = vld [vmem:[#allocation2 + $0x70] sm:$0xff]
      %v672 = vld [vmem:[#allocation2 + $0x78] sm:$0xff]
      %v673 = vld [vmem:[#allocation2 + $0x80] sm:$0xff]
      %v674 = vld [vmem:[#allocation2 + $0x88] sm:$0xff]
      %v675 = vld [vmem:[#allocation2 + $0x90] sm:$0xff]
      %v676 = vld [vmem:[#allocation2 + $0x98] sm:$0xff]
      %v677 = vld [vmem:[#allocation2 + $0xa0] sm:$0xff]
      %v678 = vld [vmem:[#allocation2 + $0xa8] sm:$0xff]
      %v679 = vld [vmem:[#allocation2 + $0xb0] sm:$0xff]
      %v680 = vld [vmem:[#allocation2 + $0xb8] sm:$0xff]
      %v681 = vld [vmem:[#allocation2 + $0xc0] sm:$0xff]
      %v682 = vld [vmem:[#allocation2 + $0xc8] sm:$0xff]
      %v683 = vld [vmem:[#allocation2 + $0xd0] sm:$0xff]
      %v684 = vld [vmem:[#allocation2 + $0xd8] sm:$0xff]
      %v685 = vld [vmem:[#allocation2 + $0xe0] sm:$0xff]
      %v686 = vld [vmem:[#allocation2 + $0xe8] sm:$0xff]
      %v687 = vld [vmem:[#allocation2 + $0xf0] sm:$0xff]
      %v688 = vld [vmem:[#allocation2 + $0xf8] sm:$0xff]
      %v689 = vmax.f32 %v657, 0.0
      %v690 = vmax.f32 %v658, 0.0
      %v691 = vmax.f32 %v659, 0.0
      %v692 = vmax.f32 %v660, 0.0
      %v693 = vmax.f32 %v661, 0.0
      %v694 = vmax.f32 %v662, 0.0
      %v695 = vmax.f32 %v663, 0.0
      %v696 = vmax.f32 %v664, 0.0
      %v697 = vmax.f32 %v665, 0.0
      %v698 = vmax.f32 %v666, 0.0
      %v699 = vmax.f32 %v667, 0.0
      %v700 = vmax.f32 %v668, 0.0
      %v701 = vmax.f32 %v669, 0.0
      %v702 = vmax.f32 %v670, 0.0
      %v703 = vmax.f32 %v671, 0.0
      %v704 = vmax.f32 %v672, 0.0
      %v705 = vmax.f32 %v673, 0.0
      %v706 = vmax.f32 %v674, 0.0
      %v707 = vmax.f32 %v675, 0.0
      %v708 = vmax.f32 %v676, 0.0
      %v709 = vmax.f32 %v677, 0.0
      %v710 = vmax.f32 %v678, 0.0
      %v711 = vmax.f32 %v679, 0.0
      %v712 = vmax.f32 %v680, 0.0
      %v713 = vmax.f32 %v681, 0.0
      %v714 = vmax.f32 %v682, 0.0
      %v715 = vmax.f32 %v683, 0.0
      %v716 = vmax.f32 %v684, 0.0
      %v717 = vmax.f32 %v685, 0.0
      %v718 = vmax.f32 %v686, 0.0
      %v719 = vmax.f32 %v687, 0.0
      %v720 = vmax.f32 %v688, 0.0
      %v721 = vmul.f32 %v689, %v689
      %v722 = vmul.f32 %v690, %v690
      %v723 = vmul.f32 %v691, %v691
      %v724 = vmul.f32 %v692, %v692
      %v725 = vmul.f32 %v693, %v693
      %v726 = vmul.f32 %v694, %v694
      %v727 = vmul.f32 %v695, %v695
      %v728 = vmul.f32 %v696, %v696
      %v729 = vmul.f32 %v697, %v697
      %v730 = vmul.f32 %v698, %v698
      %v731 = vmul.f32 %v699, %v699
      %v732 = vmul.f32 %v700, %v700
      %v733 = vmul.f32 %v701, %v701
      %v734 = vmul.f32 %v702, %v702
      %v735 = vmul.f32 %v703, %v703
      %v736 = vmul.f32 %v704, %v704
      %v737 = vmul.f32 %v705, %v705
      %v738 = vmul.f32 %v706, %v706
      %v739 = vmul.f32 %v707, %v707
      %v740 = vmul.f32 %v708, %v708
      %v741 = vmul.f32 %v709, %v709
      %v742 = vmul.f32 %v710, %v710
      %v743 = vmul.f32 %v711, %v711
      %v744 = vmul.f32 %v712, %v712
      %v745 = vmul.f32 %v713, %v713
      %v746 = vmul.f32 %v714, %v714
      %v747 = vmul.f32 %v715, %v715
      %v748 = vmul.f32 %v716, %v716
      %v749 = vmul.f32 %v717, %v717
      %v750 = vmul.f32 %v718, %v718
      %v751 = vmul.f32 %v719, %v719
      %v752 = vmul.f32 %v720, %v720
      %753 = vadd.xlane.f32.xlu0 %v721
      %v754 = vpop.xlane.xlu0 %753
      %755 = vadd.xlane.f32.xlu0 %v722
      %v756 = vpop.xlane.xlu0 %755
      %757 = vadd.xlane.f32.xlu0 %v723
      %v758 = vpop.xlane.xlu0 %757
      %759 = vadd.xlane.f32.xlu0 %v724
      %v760 = vpop.xlane.xlu0 %759
      %761 = vadd.xlane.f32.xlu0 %v725
      %v762 = vpop.xlane.xlu0 %761
      %763 = vadd.xlane.f32.xlu0 %v726
      %v764 = vpop.xlane.xlu0 %763
      %765 = vadd.xlane.f32.xlu0 %v727
      %v766 = vpop.xlane.xlu0 %765
      %767 = vadd.xlane.f32.xlu0 %v728
      %v768 = vpop.xlane.xlu0 %767
      %769 = vadd.xlane.f32.xlu0 %v729
      %v770 = vpop.xlane.xlu0 %769
      %771 = vadd.xlane.f32.xlu0 %v730
      %v772 = vpop.xlane.xlu0 %771
      %773 = vadd.xlane.f32.xlu0 %v731
      %v774 = vpop.xlane.xlu0 %773
      %775 = vadd.xlane.f32.xlu0 %v732
      %v776 = vpop.xlane.xlu0 %775
      %777 = vadd.xlane.f32.xlu0 %v733
      %v778 = vpop.xlane.xlu0 %777
      %779 = vadd.xlane.f32.xlu0 %v734
      %v780 = vpop.xlane.xlu0 %779
      %781 = vadd.xlane.f32.xlu0 %v735
      %v782 = vpop.xlane.xlu0 %781
      %783 = vadd.xlane.f32.xlu0 %v736
      %v784 = vpop.xlane.xlu0 %783
      %785 = vadd.xlane.f32.xlu0 %v737
      %v786 = vpop.xlane.xlu0 %785
      %787 = vadd.xlane.f32.xlu0 %v738
      %v788 = vpop.xlane.xlu0 %787
      %789 = vadd.xlane.f32.xlu0 %v739
      %v790 = vpop.xlane.xlu0 %789
      %791 = vadd.xlane.f32.xlu0 %v740
      %v792 = vpop.xlane.xlu0 %791
      %793 = vadd.xlane.f32.xlu0 %v741
      %v794 = vpop.xlane.xlu0 %793
      %795 = vadd.xlane.f32.xlu0 %v742
      %v796 = vpop.xlane.xlu0 %795
      %797 = vadd.xlane.f32.xlu0 %v743
      %v798 = vpop.xlane.xlu0 %797
      %799 = vadd.xlane.f32.xlu0 %v744
      %v800 = vpop.xlane.xlu0 %799
      %801 = vadd.xlane.f32.xlu0 %v745
      %v802 = vpop.xlane.xlu0 %801
      %803 = vadd.xlane.f32.xlu0 %v746
      %v804 = vpop.xlane.xlu0 %803
      %805 = vadd.xlane.f32.xlu0 %v747
      %v806 = vpop.xlane.xlu0 %805
      %807 = vadd.xlane.f32.xlu0 %v748
      %v808 = vpop.xlane.xlu0 %807
      %809 = vadd.xlane.f32.xlu0 %v749
      %v810 = vpop.xlane.xlu0 %809
      %811 = vadd.xlane.f32.xlu0 %v750
      %v812 = vpop.xlane.xlu0 %811
      %813 = vadd.xlane.f32.xlu0 %v751
      %v814 = vpop.xlane.xlu0 %813
      %815 = vadd.xlane.f32.xlu0 %v752
      %v816 = vpop.xlane.xlu0 %815
      %v817 = vmax.f32 %v754, 1e-24
      %v818 = vmax.f32 %v756, 1e-24
      %v819 = vmax.f32 %v758, 1e-24
      %v820 = vmax.f32 %v760, 1e-24
      %v821 = vmax.f32 %v762, 1e-24
      %v822 = vmax.f32 %v764, 1e-24
      %v823 = vmax.f32 %v766, 1e-24
      %v824 = vmax.f32 %v768, 1e-24
      %v825 = vmax.f32 %v770, 1e-24
      %v826 = vmax.f32 %v772, 1e-24
      %v827 = vmax.f32 %v774, 1e-24
      %v828 = vmax.f32 %v776, 1e-24
      %v829 = vmax.f32 %v778, 1e-24
      %v830 = vmax.f32 %v780, 1e-24
      %v831 = vmax.f32 %v782, 1e-24
      %v832 = vmax.f32 %v784, 1e-24
      %v833 = vmax.f32 %v786, 1e-24
      %v834 = vmax.f32 %v788, 1e-24
      %v835 = vmax.f32 %v790, 1e-24
      %v836 = vmax.f32 %v792, 1e-24
      %v837 = vmax.f32 %v794, 1e-24
      %v838 = vmax.f32 %v796, 1e-24
      %v839 = vmax.f32 %v798, 1e-24
      %v840 = vmax.f32 %v800, 1e-24
      %v841 = vmax.f32 %v802, 1e-24
      %v842 = vmax.f32 %v804, 1e-24
      %v843 = vmax.f32 %v806, 1e-24
      %v844 = vmax.f32 %v808, 1e-24
      %v845 = vmax.f32 %v810, 1e-24
      %v846 = vmax.f32 %v812, 1e-24
      %v847 = vmax.f32 %v814, 1e-24
      %v848 = vmax.f32 %v816, 1e-24
      %v849 = vrsqrt.pop %v817
      %v850 = vrsqrt.pop %v818
      %v851 = vrsqrt.pop %v819
      %v852 = vrsqrt.pop %v820
      %v853 = vrsqrt.pop %v821
      %v854 = vrsqrt.pop %v822
      %v855 = vrsqrt.pop %v823
      %v856 = vrsqrt.pop %v824
      %v857 = vrsqrt.pop %v825
      %v858 = vrsqrt.pop %v826
      %v859 = vrsqrt.pop %v827
      %v860 = vrsqrt.pop %v828
      %v861 = vrsqrt.pop %v829
      %v862 = vrsqrt.pop %v830
      %v863 = vrsqrt.pop %v831
      %v864 = vrsqrt.pop %v832
      %v865 = vrsqrt.pop %v833
      %v866 = vrsqrt.pop %v834
      %v867 = vrsqrt.pop %v835
      %v868 = vrsqrt.pop %v836
      %v869 = vrsqrt.pop %v837
      %v870 = vrsqrt.pop %v838
      %v871 = vrsqrt.pop %v839
      %v872 = vrsqrt.pop %v840
      %v873 = vrsqrt.pop %v841
      %v874 = vrsqrt.pop %v842
      %v875 = vrsqrt.pop %v843
      %v876 = vrsqrt.pop %v844
      %v877 = vrsqrt.pop %v845
      %v878 = vrsqrt.pop %v846
      %v879 = vrsqrt.pop %v847
      %v880 = vrsqrt.pop %v848
      %v881 = vmul.f32 %v689, %v849
      %v882 = vmul.f32 %v690, %v850
      %v883 = vmul.f32 %v691, %v851
      %v884 = vmul.f32 %v692, %v852
      %v885 = vmul.f32 %v693, %v853
      %v886 = vmul.f32 %v694, %v854
      %v887 = vmul.f32 %v695, %v855
      %v888 = vmul.f32 %v696, %v856
      %v889 = vmul.f32 %v697, %v857
      %v890 = vmul.f32 %v698, %v858
      %v891 = vmul.f32 %v699, %v859
      %v892 = vmul.f32 %v700, %v860
      %v893 = vmul.f32 %v701, %v861
      %v894 = vmul.f32 %v702, %v862
      %v895 = vmul.f32 %v703, %v863
      %v896 = vmul.f32 %v704, %v864
      %v897 = vmul.f32 %v705, %v865
      %v898 = vmul.f32 %v706, %v866
      %v899 = vmul.f32 %v707, %v867
      %v900 = vmul.f32 %v708, %v868
      %v901 = vmul.f32 %v709, %v869
      %v902 = vmul.f32 %v710, %v870
      %v903 = vmul.f32 %v711, %v871
      %v904 = vmul.f32 %v712, %v872
      %v905 = vmul.f32 %v713, %v873
      %v906 = vmul.f32 %v714, %v874
      %v907 = vmul.f32 %v715, %v875
      %v908 = vmul.f32 %v716, %v876
      %v909 = vmul.f32 %v717, %v877
      %v910 = vmul.f32 %v718, %v878
      %v911 = vmul.f32 %v719, %v879
      %v912 = vmul.f32 %v720, %v880
      %913 = vst [vmem:[#allocation8] sm:$0xff] %v881
      %914 = vst [vmem:[#allocation8 + $0x8] sm:$0xff] %v882
      %915 = vst [vmem:[#allocation8 + $0x10] sm:$0xff] %v883
      %916 = vst [vmem:[#allocation8 + $0x18] sm:$0xff] %v884
      %917 = vst [vmem:[#allocation8 + $0x20] sm:$0xff] %v885
      %918 = vst [vmem:[#allocation8 + $0x28] sm:$0xff] %v886
      %919 = vst [vmem:[#allocation8 + $0x30] sm:$0xff] %v887
      %920 = vst [vmem:[#allocation8 + $0x38] sm:$0xff] %v888
      %921 = vst [vmem:[#allocation8 + $0x40] sm:$0xff] %v889
      %922 = vst [vmem:[#allocation8 + $0x48] sm:$0xff] %v890
      %923 = vst [vmem:[#allocation8 + $0x50] sm:$0xff] %v891
      %924 = vst [vmem:[#allocation8 + $0x58] sm:$0xff] %v892
      %925 = vst [vmem:[#allocation8 + $0x60] sm:$0xff] %v893
      %926 = vst [vmem:[#allocation8 + $0x68] sm:$0xff] %v894
      %927 = vst [vmem:[#allocation8 + $0x70] sm:$0xff] %v895
      %928 = vst [vmem:[#allocation8 + $0x78] sm:$0xff] %v896
      %929 = vst [vmem:[#allocation8 + $0x80] sm:$0xff] %v897
      %930 = vst [vmem:[#allocation8 + $0x88] sm:$0xff] %v898
      %931 = vst [vmem:[#allocation8 + $0x90] sm:$0xff] %v899
      %932 = vst [vmem:[#allocation8 + $0x98] sm:$0xff] %v900
      %933 = vst [vmem:[#allocation8 + $0xa0] sm:$0xff] %v901
      %934 = vst [vmem:[#allocation8 + $0xa8] sm:$0xff] %v902
      %935 = vst [vmem:[#allocation8 + $0xb0] sm:$0xff] %v903
      %936 = vst [vmem:[#allocation8 + $0xb8] sm:$0xff] %v904
      %937 = vst [vmem:[#allocation8 + $0xc0] sm:$0xff] %v905
      %938 = vst [vmem:[#allocation8 + $0xc8] sm:$0xff] %v906
      %939 = vst [vmem:[#allocation8 + $0xd0] sm:$0xff] %v907
      %940 = vst [vmem:[#allocation8 + $0xd8] sm:$0xff] %v908
      %941 = vst [vmem:[#allocation8 + $0xe0] sm:$0xff] %v909
      %942 = vst [vmem:[#allocation8 + $0xe8] sm:$0xff] %v910
      %943 = vst [vmem:[#allocation8 + $0xf0] sm:$0xff] %v911
      %944 = vst [vmem:[#allocation8 + $0xf8] sm:$0xff] %v912
    $region25: #{tpu_custom_call.1} parent=1 // pred_fallthru
      _
    // Predicated region
    $region26: #{tpu_custom_call.1} parent=1 // pred_check
      _
    $region27: #{tpu_custom_call.1} parent=1 // pred_check_branch
      %946 = sbr.rel (0) target = $region29
    $region28: #{tpu_custom_call.1} parent=1 // pred_region
      %s948 = ssub.s32 4096, 4096
      %949 = vsyncadd [#allocation5], %s948
      %s950 = sshll.u32 [#allocation8], 4
      %s951 = int_to_ptr.vmem [resolvable:$true] %s950
      %956 = dma.vmem_to_hbm [thread:$0]  %s951, 4096, %s2, [#allocation5], 128, 128, 8
    $region29: #{tpu_custom_call.1} parent=1 // pred_fallthru
      _
    // Predicated region
    $region30: #{tpu_custom_call.1} parent=1 // pred_check
      _
    $region31: #{tpu_custom_call.1} parent=1 // pred_check_branch
      %958 = sbr.rel (0) target = $region33
    $region32: #{tpu_custom_call.1} parent=1 // pred_region
      %959 = dma.done [#allocation5], 4096
    $region33: #{tpu_custom_call.1} parent=1 // pred_fallthru
      _
    %960 = vsyncpa [#allocation4], 1
    %961 = vsyncpa [#allocation7], 1
    %962 = vsyncpa [#allocation5], 1

</llo_original>
